<compile_context>
chip_gen: v7x
topology: tpu7x:2x2x1
jax: 0.10.0
libtpu: 0.0.40
codegen_flags: <defaults>
</compile_context>

<pallas_src>
import jax
import jax.numpy as jnp
from jax.experimental import pallas as pl
from jax.experimental.pallas import tpu as pltpu

_C_PAD = 128  # pad num_classes up to one full lane group for dense stores


def _sbert_cls_kernel(emb1_ref, mask1_ref, emb2_ref, mask2_ref,
                      w1_ref, w2_ref, w3_ref, b_ref, out_ref):
    # Embeddings arrive bf16; all math in f32.
    emb1 = emb1_ref[...].astype(jnp.float32)        # [TB, S, H]
    emb2 = emb2_ref[...].astype(jnp.float32)        # [TB, S, H]
    m1 = mask1_ref[...]                             # [TB, S, 1] f32
    m2 = mask2_ref[...]                             # [TB, S, 1] f32

    # mean pooling (matches torch: sum(emb*mask)/clamp(sum(mask), min=1e-9))
    sum1 = jnp.sum(emb1 * m1, axis=1)               # [TB, H]
    sum2 = jnp.sum(emb2 * m2, axis=1)               # [TB, H]
    cnt1 = jnp.maximum(jnp.sum(m1, axis=1), 1e-9)   # [TB, 1]
    cnt2 = jnp.maximum(jnp.sum(m2, axis=1), 1e-9)   # [TB, 1]
    pool1 = sum1 * pl.reciprocal(cnt1, approx=False)
    pool2 = sum2 * pl.reciprocal(cnt2, approx=False)
    abs_diff = jnp.abs(pool1 - pool2)               # [TB, H]

    # classifier: concat([u, v, |u-v|]) @ W + b, without materializing the concat
    logits = jnp.dot(pool1, w1_ref[...], preferred_element_type=jnp.float32)
    logits = logits + jnp.dot(pool2, w2_ref[...], preferred_element_type=jnp.float32)
    logits = logits + jnp.dot(abs_diff, w3_ref[...], preferred_element_type=jnp.float32)
    out_ref[...] = (logits + b_ref[...]).astype(out_ref.dtype)


def _pick_batch_tile(B, S, H, emb_bytes, vmem_budget_bytes):
    """Largest batch tile whose double-buffered footprint fits the budget."""
    # Per batch row:
    #   2 embedding tensors x 2 pipeline buffers (HBM dtype)
    # + 2 in-kernel f32 temporaries ([TB,S,H] after the astype)
    # + 2 masks x 2 buffers ([S,1] f32, lane-padded small)
    # + padded f32 output tile.
    per_row = (2 * 2 * S * H * emb_bytes
               + 2 * S * H * 4
               + 2 * 2 * S * 4
               + 2 * _C_PAD * 4)
    tb = int(max(1, min(B, vmem_budget_bytes // max(per_row, 1))))
    # Output tile (TB, 128): TB must be a multiple of 8 or the full batch,
    # and divide B so the grid covers the batch exactly.
    for cand in range(tb, 0, -1):
        if B % cand == 0 and (cand % 8 == 0 or cand == B):
            return cand
    return B


def sbert_classification_forward(emb1, mask1, emb2, mask2, w, b):
    """Mean-pool both sentence embeddings, combine (u, v, |u-v|), linear head.

    emb1/emb2: [B, S, H] token embeddings (bf16 or f32) from the base model.
    mask1/mask2: [B, S] attention masks (int or float 0/1).
    w: [3H, C] classifier weight (in-features first). b: [C] or [1, C] bias.
    """
    B, S, H = emb1.shape
    C = w.shape[1]

    # Masks as [B, S, 1] f32: S maps to sublanes; broadcast over H inside the
    # kernel is a lane-broadcast (no XLU relayout).
    m1 = mask1.astype(jnp.float32).reshape(B, S, 1)
    m2 = mask2.astype(jnp.float32).reshape(B, S, 1)

    # Pad C -> 128 lanes (dense output stores) and split W so the kernel never
    # builds the [TB, 3H] concat buffer.
    w_f32 = w.astype(jnp.float32)
    w_pad = jnp.zeros((3 * H, _C_PAD), jnp.float32).at[:, :C].set(w_f32)
    w1, w2, w3 = w_pad[:H], w_pad[H:2 * H], w_pad[2 * H:]
    b_pad = jnp.zeros((1, _C_PAD), jnp.float32).at[:, :C].set(
        b.reshape(1, C).astype(jnp.float32))

    # VMEM plan: limit 32 MiB works within every generation's scoped default
    # headroom (v5e/v6e: 128 MiB physical, v7x: 64 MiB physical). Tiles are
    # sized against ~3/4 of that, minus the VMEM-resident classifier params.
    vmem_limit = 32 * 1024 * 1024
    const_bytes = 2 * (3 * H * _C_PAD * 4 + _C_PAD * 4)
    budget = (3 * vmem_limit) // 4 - const_bytes
    tb = _pick_batch_tile(B, S, H, jnp.dtype(emb1.dtype).itemsize, budget)
    nb = B // tb

    grid_spec = pltpu.PrefetchScalarGridSpec(
        num_scalar_prefetch=0,
        grid=(nb,),
        in_specs=[
            pl.BlockSpec((tb, S, H), lambda i: (i, 0, 0)),   # emb1
            pl.BlockSpec((tb, S, 1), lambda i: (i, 0, 0)),   # mask1
            pl.BlockSpec((tb, S, H), lambda i: (i, 0, 0)),   # emb2
            pl.BlockSpec((tb, S, 1), lambda i: (i, 0, 0)),   # mask2
            pl.BlockSpec((H, _C_PAD), lambda i: (0, 0)),     # w1 (resident)
            pl.BlockSpec((H, _C_PAD), lambda i: (0, 0)),     # w2 (resident)
            pl.BlockSpec((H, _C_PAD), lambda i: (0, 0)),     # w3 (resident)
            pl.BlockSpec((1, _C_PAD), lambda i: (0, 0)),     # bias (resident)
        ],
        out_specs=pl.BlockSpec((tb, _C_PAD), lambda i: (i, 0)),
    )

    out_pad = pl.pallas_call(
        _sbert_cls_kernel,
        out_shape=jax.ShapeDtypeStruct((B, _C_PAD), jnp.float32),
        grid_spec=grid_spec,
        compiler_params=pltpu.CompilerParams(
            dimension_semantics=("parallel",),   # v7x: 2 TCs split batch tiles
            vmem_limit_bytes=vmem_limit),
    )(emb1, m1, emb2, m2, w1, w2, w3, b_pad)

    return out_pad[:, :C]


def _reference(emb1, mask1, emb2, mask2, w, b):
    def pool(e, m):
        me = m[:, :, None].astype(jnp.float32)
        s = jnp.sum(e.astype(jnp.float32) * me, axis=1)
        c = jnp.maximum(jnp.sum(me, axis=1), 1e-9)
        return s / c
    p1 = pool(emb1, mask1)
    p2 = pool(emb2, mask2)
    comb = jnp.concatenate([p1, p2, jnp.abs(p1 - p2)], axis=1)
    return jnp.dot(comb, w.astype(jnp.float32),
                   precision=jax.lax.Precision.HIGHEST) + b.reshape(1, -1)


if __name__ == "__main__":
    # Small shapes consistent with the module (hidden_size, num_classes=3).
    B, S, H, C = 8, 8, 128, 3

    key = jax.random.PRNGKey(0)
    k1, k2, k3, k4, k5, k6 = jax.random.split(key, 6)

    # Synthetic "base_model" outputs (last_hidden_state for both sentences),
    # kept bf16 in HBM — this kernel is HBM-read bound on these two tensors.
    emb1 = jax.random.normal(k1, (B, S, H), dtype=jnp.float32).astype(jnp.bfloat16)
    emb2 = jax.random.normal(k2, (B, S, H), dtype=jnp.float32).astype(jnp.bfloat16)

    # Attention masks: leading ones, trailing zeros (varied lengths).
    lens1 = 1 + jax.random.randint(k3, (B,), 0, S)
    lens2 = 1 + jax.random.randint(k4, (B,), 0, S)
    pos = jnp.arange(S)[None, :]
    mask1 = (pos < lens1[:, None]).astype(jnp.int32)
    mask2 = (pos < lens2[:, None]).astype(jnp.int32)

    # Deterministic classifier parameters: Linear(3*H, C).
    w = (jax.random.normal(k5, (3 * H, C), dtype=jnp.float32)
         * (1.0 / jnp.sqrt(3.0 * H)))
    b = jax.random.normal(k6, (C,), dtype=jnp.float32) * 0.01

    logits = sbert_classification_forward(emb1, mask1, emb2, mask2, w, b)
    logits = jax.block_until_ready(logits)

    ref = _reference(emb1, mask1, emb2, mask2, w, b)
    assert logits.shape == (B, C)
    assert jnp.allclose(logits, ref, atol=1e-3, rtol=1e-3), "mismatch vs reference"

    print("KERNEL_OK")
</pallas_src>

<mosaic_0001>
module attributes {stable_mosaic.version = 11 : i64} {
  func.func @_sbert_cls_kernel(%arg0: i32, %arg1: memref<8x8x128xbf16, #tpu.memory_space<vmem>>, %arg2: memref<8x8x1xf32, #tpu.memory_space<vmem>>, %arg3: memref<8x8x128xbf16, #tpu.memory_space<vmem>>, %arg4: memref<8x8x1xf32, #tpu.memory_space<vmem>>, %arg5: memref<128x128xf32, #tpu.memory_space<vmem>>, %arg6: memref<128x128xf32, #tpu.memory_space<vmem>>, %arg7: memref<128x128xf32, #tpu.memory_space<vmem>>, %arg8: memref<1x128xf32, #tpu.memory_space<vmem>>, %arg9: memref<8x128xf32, #tpu.memory_space<vmem>>) attributes {dimension_semantics = [#tpu.dimension_semantics<parallel>], iteration_bounds = array<i64: 1>, scalar_prefetch = 0 : i64, scratch_operands = 0 : i64, tpu.core_type = #tpu.core_type<tc>, window_params = [{transform_indices = @transform_0, window_bounds = array<i64: 8, 8, 128>}, {transform_indices = @transform_1, window_bounds = array<i64: 8, 8, 1>}, {transform_indices = @transform_2, window_bounds = array<i64: 8, 8, 128>}, {transform_indices = @transform_3, window_bounds = array<i64: 8, 8, 1>}, {pipeline_mode = #tpu.pipeline_mode<synchronous>, transform_indices = @transform_4, window_bounds = array<i64: 128, 128>}, {pipeline_mode = #tpu.pipeline_mode<synchronous>, transform_indices = @transform_5, window_bounds = array<i64: 128, 128>}, {pipeline_mode = #tpu.pipeline_mode<synchronous>, transform_indices = @transform_6, window_bounds = array<i64: 128, 128>}, {pipeline_mode = #tpu.pipeline_mode<synchronous>, transform_indices = @transform_7, window_bounds = array<i64: 1, 128>}, {transform_indices = @transform_8, window_bounds = array<i64: 8, 128>}]} {
    %c0 = arith.constant 0 : index
    %c0_0 = arith.constant 0 : index
    %c0_1 = arith.constant 0 : index
    %0 = vector.load %arg1[%c0, %c0_0, %c0_1] : memref<8x8x128xbf16, #tpu.memory_space<vmem>>, vector<8x8x128xbf16>
    %1 = arith.extf %0 : vector<8x8x128xbf16> to vector<8x8x128xf32>
    %c0_2 = arith.constant 0 : index
    %c0_3 = arith.constant 0 : index
    %c0_4 = arith.constant 0 : index
    %2 = vector.load %arg3[%c0_2, %c0_3, %c0_4] : memref<8x8x128xbf16, #tpu.memory_space<vmem>>, vector<8x8x128xbf16>
    %3 = arith.extf %2 : vector<8x8x128xbf16> to vector<8x8x128xf32>
    %c0_5 = arith.constant 0 : index
    %c0_6 = arith.constant 0 : index
    %c0_7 = arith.constant 0 : index
    %4 = vector.load %arg2[%c0_5, %c0_6, %c0_7] : memref<8x8x1xf32, #tpu.memory_space<vmem>>, vector<8x8x1xf32>
    %c0_8 = arith.constant 0 : index
    %c0_9 = arith.constant 0 : index
    %c0_10 = arith.constant 0 : index
    %5 = vector.load %arg4[%c0_8, %c0_9, %c0_10] : memref<8x8x1xf32, #tpu.memory_space<vmem>>, vector<8x8x1xf32>
    %6 = vector.broadcast %4 : vector<8x8x1xf32> to vector<8x8x128xf32>
    %7 = arith.mulf %1, %6 : vector<8x8x128xf32>
    %cst = arith.constant dense<0.000000e+00> : vector<8x128xf32>
    %8 = vector.multi_reduction <add>, %7, %cst [1] : vector<8x8x128xf32> to vector<8x128xf32>
    %9 = vector.broadcast %5 : vector<8x8x1xf32> to vector<8x8x128xf32>
    %10 = arith.mulf %3, %9 : vector<8x8x128xf32>
    %cst_11 = arith.constant dense<0.000000e+00> : vector<8x128xf32>
    %11 = vector.multi_reduction <add>, %10, %cst_11 [1] : vector<8x8x128xf32> to vector<8x128xf32>
    %cst_12 = arith.constant dense<0.000000e+00> : vector<8x1xf32>
    %12 = vector.multi_reduction <add>, %4, %cst_12 [1] : vector<8x8x1xf32> to vector<8x1xf32>
    %cst_13 = arith.constant 9.99999971E-10 : f32
    %13 = vector.broadcast %cst_13 : f32 to vector<8x1xf32>
    %14 = arith.maximumf %12, %13 : vector<8x1xf32>
    %cst_14 = arith.constant dense<0.000000e+00> : vector<8x1xf32>
    %15 = vector.multi_reduction <add>, %5, %cst_14 [1] : vector<8x8x1xf32> to vector<8x1xf32>
    %cst_15 = arith.constant 9.99999971E-10 : f32
    %16 = vector.broadcast %cst_15 : f32 to vector<8x1xf32>
    %17 = arith.maximumf %15, %16 : vector<8x1xf32>
    %18 = tpu.reciprocal %14 : vector<8x1xf32> -> vector<8x1xf32>
    %19 = vector.broadcast %18 : vector<8x1xf32> to vector<8x128xf32>
    %20 = arith.mulf %8, %19 : vector<8x128xf32>
    %21 = tpu.reciprocal %17 : vector<8x1xf32> -> vector<8x1xf32>
    %22 = vector.broadcast %21 : vector<8x1xf32> to vector<8x128xf32>
    %23 = arith.mulf %11, %22 : vector<8x128xf32>
    %24 = arith.subf %20, %23 : vector<8x128xf32>
    %25 = math.absf %24 : vector<8x128xf32>
    %c0_16 = arith.constant 0 : index
    %c0_17 = arith.constant 0 : index
    %26 = vector.load %arg5[%c0_16, %c0_17] : memref<128x128xf32, #tpu.memory_space<vmem>>, vector<128x128xf32>
    %cst_18 = arith.constant dense<0.000000e+00> : vector<8x128xf32>
    %27 = tpu.matmul %20, %26, %cst_18 {dimension_numbers = #tpu.dot_dimension_numbers<[1], [0], [0], [1], [0, 0, 1, 1], [], []>} : vector<8x128xf32>, vector<128x128xf32>, vector<8x128xf32> -> vector<8x128xf32>
    %c0_19 = arith.constant 0 : index
    %c0_20 = arith.constant 0 : index
    %28 = vector.load %arg6[%c0_19, %c0_20] : memref<128x128xf32, #tpu.memory_space<vmem>>, vector<128x128xf32>
    %cst_21 = arith.constant dense<0.000000e+00> : vector<8x128xf32>
    %29 = tpu.matmul %23, %28, %cst_21 {dimension_numbers = #tpu.dot_dimension_numbers<[1], [0], [0], [1], [0, 0, 1, 1], [], []>} : vector<8x128xf32>, vector<128x128xf32>, vector<8x128xf32> -> vector<8x128xf32>
    %30 = arith.addf %27, %29 : vector<8x128xf32>
    %c0_22 = arith.constant 0 : index
    %c0_23 = arith.constant 0 : index
    %31 = vector.load %arg7[%c0_22, %c0_23] : memref<128x128xf32, #tpu.memory_space<vmem>>, vector<128x128xf32>
    %cst_24 = arith.constant dense<0.000000e+00> : vector<8x128xf32>
    %32 = tpu.matmul %25, %31, %cst_24 {dimension_numbers = #tpu.dot_dimension_numbers<[1], [0], [0], [1], [0, 0, 1, 1], [], []>} : vector<8x128xf32>, vector<128x128xf32>, vector<8x128xf32> -> vector<8x128xf32>
    %33 = arith.addf %30, %32 : vector<8x128xf32>
    %c0_25 = arith.constant 0 : index
    %c0_26 = arith.constant 0 : index
    %34 = vector.load %arg8[%c0_25, %c0_26] : memref<1x128xf32, #tpu.memory_space<vmem>>, vector<1x128xf32>
    %35 = vector.broadcast %34 : vector<1x128xf32> to vector<8x128xf32>
    %36 = arith.addf %33, %35 : vector<8x128xf32>
    %c0_27 = arith.constant 0 : index
    %c0_28 = arith.constant 0 : index
    %37 = vector.load %arg9[%c0_27, %c0_28] : memref<8x128xf32, #tpu.memory_space<vmem>>, vector<8x128xf32>
    tpu.vector_store %arg9[%c0_27, %c0_28], %36 {strides = array<i32>} : memref<8x128xf32, #tpu.memory_space<vmem>>, vector<8x128xf32>,
    return
  }
  func.func @transform_0(%arg0: i32) -> (i32, i32, i32) {
    %c0_i32 = arith.constant 0 : i32
    %c0_i32_0 = arith.constant 0 : i32
    %c0_i32_1 = arith.constant 0 : i32
    return %arg0, %c0_i32, %c0_i32_0 : i32, i32, i32
  }
  func.func @transform_1(%arg0: i32) -> (i32, i32, i32) {
    %c0_i32 = arith.constant 0 : i32
    %c0_i32_0 = arith.constant 0 : i32
    %c0_i32_1 = arith.constant 0 : i32
    return %arg0, %c0_i32, %c0_i32_0 : i32, i32, i32
  }
  func.func @transform_2(%arg0: i32) -> (i32, i32, i32) {
    %c0_i32 = arith.constant 0 : i32
    %c0_i32_0 = arith.constant 0 : i32
    %c0_i32_1 = arith.constant 0 : i32
    return %arg0, %c0_i32, %c0_i32_0 : i32, i32, i32
  }
  func.func @transform_3(%arg0: i32) -> (i32, i32, i32) {
    %c0_i32 = arith.constant 0 : i32
    %c0_i32_0 = arith.constant 0 : i32
    %c0_i32_1 = arith.constant 0 : i32
    return %arg0, %c0_i32, %c0_i32_0 : i32, i32, i32
  }
  func.func @transform_4(%arg0: i32) -> (i32, i32) {
    %c0_i32 = arith.constant 0 : i32
    %c0_i32_0 = arith.constant 0 : i32
    %c0_i32_1 = arith.constant 0 : i32
    return %c0_i32, %c0_i32_0 : i32, i32
  }
  func.func @transform_5(%arg0: i32) -> (i32, i32) {
    %c0_i32 = arith.constant 0 : i32
    %c0_i32_0 = arith.constant 0 : i32
    %c0_i32_1 = arith.constant 0 : i32
    return %c0_i32, %c0_i32_0 : i32, i32
  }
  func.func @transform_6(%arg0: i32) -> (i32, i32) {
    %c0_i32 = arith.constant 0 : i32
    %c0_i32_0 = arith.constant 0 : i32
    %c0_i32_1 = arith.constant 0 : i32
    return %c0_i32, %c0_i32_0 : i32, i32
  }
  func.func @transform_7(%arg0: i32) -> (i32, i32) {
    %c0_i32 = arith.constant 0 : i32
    %c0_i32_0 = arith.constant 0 : i32
    %c0_i32_1 = arith.constant 0 : i32
    return %c0_i32, %c0_i32_0 : i32, i32
  }
  func.func @transform_8(%arg0: i32) -> (i32, i32) {
    %c0_i32 = arith.constant 0 : i32
    %c0_i32_0 = arith.constant 0 : i32
    return %arg0, %c0_i32 : i32, i32
  }
}

</mosaic_0001>

<llo_original>
// kernel: tpu_custom_call.1
$region0: #{tpu_custom_call.1}
  #allocation0 [shape = 'u32[]', space=smem, size = 0x4, offset = 0x4, fixed_abs, tag = 'smem constant byte address 0x4 - core index']
  #allocation1 [shape = 'u32[144,128]{1,0:T(1,128)}', space=vmem, size = 0x12000, scoped, tag = 'internal scratch']
  %s0 = inlined_call_operand.hbm [shape: bf16[8,8,128], index: 0, kind: input, shape index: {}]
  %s1 = inlined_call_operand.vmem [shape: f32[8,8,1], index: 1, kind: input, shape index: {}]
  %s2 = inlined_call_operand.hbm [shape: bf16[8,8,128], index: 2, kind: input, shape index: {}]
  %s3 = inlined_call_operand.vmem [shape: f32[8,8,1], index: 3, kind: input, shape index: {}]
  %s4 = inlined_call_operand.vmem [shape: f32[128,128], index: 4, kind: input, shape index: {}]
  %s5 = inlined_call_operand.hbm [shape: f32[128,128], index: 5, kind: input, shape index: {}]
  %s6 = inlined_call_operand.hbm [shape: f32[128,128], index: 6, kind: input, shape index: {}]
  %s7 = inlined_call_operand.vmem [shape: f32[1,128], index: 7, kind: input, shape index: {}]
  %s8 = inlined_call_operand.hbm [shape: f32[8,128], index: 8, kind: output, shape index: {}]
  %s9 = sld [smem:[#allocation0]]
  $region58: #{tpu_custom_call.1} parent=0
    _
  %s11 = ssub.s32 1, %s9
  %s12 = scalar_select 0, %s11, %s9
  $region1: #{tpu_custom_call.1} parent=0
    #allocation2 [shape = 'u8[16384]{0}', space=vmem, size = 0x4000, scoped, tag = 'input window, operand 0, single buffered']
    #allocation3 [shape = 's32[1]{0}', space=sflag, size = 0x4, scoped, tag = 'scoped memory for tpu_custom_call.1']
    #allocation4 [shape = 's32[1]{0}', space=sflag, size = 0x4, scoped, tag = 'scoped memory for tpu_custom_call.1']
    #allocation5 [shape = 'u8[16384]{0}', space=vmem, size = 0x4000, scoped, tag = 'input window, operand 2, single buffered']
    #allocation6 [shape = 's32[1]{0}', space=sflag, size = 0x4, scoped, tag = 'scoped memory for tpu_custom_call.1']
    #allocation7 [shape = 'u8[65536]{0}', space=vmem, size = 0x10000, scoped, tag = 'input window, operand 5, single buffered']
    #allocation8 [shape = 'u8[65536]{0}', space=vmem, size = 0x10000, scoped, tag = 'input window, operand 6, single buffered']
    #allocation9 [shape = 's32[1]{0}', space=sflag, size = 0x4, scoped, tag = 'scoped memory for tpu_custom_call.1']
    #allocation10 [shape = 'u8[4096]{0}', space=vmem, size = 0x1000, scoped, tag = 'output window, operand 0, single buffered']
    %13 = vsyncpa [#allocation3], 0
    %14 = vsyncpa [#allocation6], 0
    %15 = vsyncpa [#allocation9], 0
    %16 = vsyncpa [#allocation4], 0
    // Predicated region
    $region2: #{tpu_custom_call.1} parent=1 // pred_check
      _
    $region3: #{tpu_custom_call.1} parent=1 // pred_check_branch
      %18 = sbr.rel (0) target = $region5
    $region4: #{tpu_custom_call.1} parent=1 // pred_region
      %s20 = ssub.s32 512, 512
      %21 = vsyncadd [#allocation3], %s20
      %s22 = sshll.u32 [#allocation2], 4
      %s23 = int_to_ptr.vmem [resolvable:$true] %s22
      %28 = dma.hbm_to_vmem [thread:$0]  %s0, 512, %s23, [#allocation3], 64, 64, 4
    $region5: #{tpu_custom_call.1} parent=1 // pred_fallthru
      _
    // Predicated region
    $region6: #{tpu_custom_call.1} parent=1 // pred_check
      _
    $region7: #{tpu_custom_call.1} parent=1 // pred_check_branch
      %30 = sbr.rel (0) target = $region9
    $region8: #{tpu_custom_call.1} parent=1 // pred_region
      _
    $region9: #{tpu_custom_call.1} parent=1 // pred_fallthru
      _
    // Predicated region
    $region10: #{tpu_custom_call.1} parent=1 // pred_check
      _
    $region11: #{tpu_custom_call.1} parent=1 // pred_check_branch
      %32 = sbr.rel (0) target = $region13
    $region12: #{tpu_custom_call.1} parent=1 // pred_region
      %s34 = ssub.s32 512, 512
      %35 = vsyncadd [#allocation6], %s34
      %s36 = sshll.u32 [#allocation5], 4
      %s37 = int_to_ptr.vmem [resolvable:$true] %s36
      %42 = dma.hbm_to_vmem [thread:$0]  %s2, 512, %s37, [#allocation6], 64, 64, 4
    $region13: #{tpu_custom_call.1} parent=1 // pred_fallthru
      _
    // Predicated region
    $region14: #{tpu_custom_call.1} parent=1 // pred_check
      _
    $region15: #{tpu_custom_call.1} parent=1 // pred_check_branch
      %44 = sbr.rel (0) target = $region17
    $region16: #{tpu_custom_call.1} parent=1 // pred_region
      _
    $region17: #{tpu_custom_call.1} parent=1 // pred_fallthru
      _
    // Predicated region
    $region18: #{tpu_custom_call.1} parent=1 // pred_check
      _
    $region19: #{tpu_custom_call.1} parent=1 // pred_check_branch
      %46 = sbr.rel (0) target = $region21
    $region20: #{tpu_custom_call.1} parent=1 // pred_region
      _
    $region21: #{tpu_custom_call.1} parent=1 // pred_fallthru
      _
    // Predicated region
    $region22: #{tpu_custom_call.1} parent=1 // pred_check
      _
    $region23: #{tpu_custom_call.1} parent=1 // pred_check_branch
      %48 = sbr.rel (0) target = $region25
    $region24: #{tpu_custom_call.1} parent=1 // pred_region
      %s50 = ssub.s32 2048, 2048
      %51 = vsyncadd [#allocation6], %s50
      %s52 = sshll.u32 [#allocation7], 4
      %s53 = int_to_ptr.vmem [resolvable:$true] %s52
      %58 = dma.hbm_to_vmem [thread:$0]  %s5, 2048, %s53, [#allocation6], 128, 128, 8
    $region25: #{tpu_custom_call.1} parent=1 // pred_fallthru
      _
    // Predicated region
    $region26: #{tpu_custom_call.1} parent=1 // pred_check
      _
    $region27: #{tpu_custom_call.1} parent=1 // pred_check_branch
      %60 = sbr.rel (0) target = $region29
    $region28: #{tpu_custom_call.1} parent=1 // pred_region
      %s62 = ssub.s32 2048, 2048
      %63 = vsyncadd [#allocation9], %s62
      %s64 = sshll.u32 [#allocation8], 4
      %s65 = int_to_ptr.vmem [resolvable:$true] %s64
      %70 = dma.hbm_to_vmem [thread:$0]  %s6, 2048, %s65, [#allocation9], 128, 128, 8
    $region29: #{tpu_custom_call.1} parent=1 // pred_fallthru
      _
    // Predicated region
    $region30: #{tpu_custom_call.1} parent=1 // pred_check
      _
    $region31: #{tpu_custom_call.1} parent=1 // pred_check_branch
      %72 = sbr.rel (0) target = $region33
    $region32: #{tpu_custom_call.1} parent=1 // pred_region
      _
    $region33: #{tpu_custom_call.1} parent=1 // pred_fallthru
      _
    // Predicated region
    $region34: #{tpu_custom_call.1} parent=1 // pred_check
      _
    $region35: #{tpu_custom_call.1} parent=1 // pred_check_branch
      %74 = sbr.rel (0) target = $region37
    $region36: #{tpu_custom_call.1} parent=1 // pred_region
      %75 = dma.done [#allocation3], 512
    $region37: #{tpu_custom_call.1} parent=1 // pred_fallthru
      _
    // Predicated region
    $region38: #{tpu_custom_call.1} parent=1 // pred_check
      _
    $region39: #{tpu_custom_call.1} parent=1 // pred_check_branch
      %77 = sbr.rel (0) target = $region41
    $region40: #{tpu_custom_call.1} parent=1 // pred_region
      %78 = dma.done [#allocation6], 512
    $region41: #{tpu_custom_call.1} parent=1 // pred_fallthru
      _
    // Predicated region
    $region42: #{tpu_custom_call.1} parent=1 // pred_check
      _
    $region43: #{tpu_custom_call.1} parent=1 // pred_check_branch
      %80 = sbr.rel (0) target = $region45
    $region44: #{tpu_custom_call.1} parent=1 // pred_region
      %81 = dma.done [#allocation6], 2048
    $region45: #{tpu_custom_call.1} parent=1 // pred_fallthru
      _
    // Predicated region
    $region46: #{tpu_custom_call.1} parent=1 // pred_check
      _
    $region47: #{tpu_custom_call.1} parent=1 // pred_check_branch
      %83 = sbr.rel (0) target = $region49
    $region48: #{tpu_custom_call.1} parent=1 // pred_region
      %84 = dma.done [#allocation9], 2048
    $region49: #{tpu_custom_call.1} parent=1 // pred_fallthru
      _
    %v85 = vld [vmem:[#allocation2] sm:$0xf]
    %v86 = vld [vmem:[#allocation2 + $0x4] sm:$0xf]
    %v87 = vld [vmem:[#allocation2 + $0x8] sm:$0xf]
    %v88 = vld [vmem:[#allocation2 + $0xc] sm:$0xf]
    %v89 = vld [vmem:[#allocation2 + $0x10] sm:$0xf]
    %v90 = vld [vmem:[#allocation2 + $0x14] sm:$0xf]
    %v91 = vld [vmem:[#allocation2 + $0x18] sm:$0xf]
    %v92 = vld [vmem:[#allocation2 + $0x1c] sm:$0xf]
    %v93 = vunpack.c.l.bf16 %v85
    %v94 = vunpack.c.l.bf16 %v86
    %v95 = vunpack.c.l.bf16 %v87
    %v96 = vunpack.c.l.bf16 %v88
    %v97 = vunpack.c.l.bf16 %v89
    %v98 = vunpack.c.l.bf16 %v90
    %v99 = vunpack.c.l.bf16 %v91
    %v100 = vunpack.c.l.bf16 %v92
    %v101 = vld [vmem:[#allocation5] sm:$0xf]
    %v102 = vld [vmem:[#allocation5 + $0x4] sm:$0xf]
    %v103 = vld [vmem:[#allocation5 + $0x8] sm:$0xf]
    %v104 = vld [vmem:[#allocation5 + $0xc] sm:$0xf]
    %v105 = vld [vmem:[#allocation5 + $0x10] sm:$0xf]
    %v106 = vld [vmem:[#allocation5 + $0x14] sm:$0xf]
    %v107 = vld [vmem:[#allocation5 + $0x18] sm:$0xf]
    %v108 = vld [vmem:[#allocation5 + $0x1c] sm:$0xf]
    %v109 = vunpack.c.l.bf16 %v101
    %v110 = vunpack.c.l.bf16 %v102
    %v111 = vunpack.c.l.bf16 %v103
    %v112 = vunpack.c.l.bf16 %v104
    %v113 = vunpack.c.l.bf16 %v105
    %v114 = vunpack.c.l.bf16 %v106
    %v115 = vunpack.c.l.bf16 %v107
    %v116 = vunpack.c.l.bf16 %v108
    %v117 = vld [vmem:[%s1] sm:$0xff]
    %v118 = vld [vmem:[%s1 + $0x8] sm:$0xff]
    %v119 = vld [vmem:[%s1 + $0x10] sm:$0xff]
    %v120 = vld [vmem:[%s1 + $0x18] sm:$0xff]
    %v121 = vld [vmem:[%s1 + $0x20] sm:$0xff]
    %v122 = vld [vmem:[%s1 + $0x28] sm:$0xff]
    %v123 = vld [vmem:[%s1 + $0x30] sm:$0xff]
    %v124 = vld [vmem:[%s1 + $0x38] sm:$0xff]
    %v125 = vld [vmem:[%s3] sm:$0xff]
    %v126 = vld [vmem:[%s3 + $0x8] sm:$0xff]
    %v127 = vld [vmem:[%s3 + $0x10] sm:$0xff]
    %v128 = vld [vmem:[%s3 + $0x18] sm:$0xff]
    %v129 = vld [vmem:[%s3 + $0x20] sm:$0xff]
    %v130 = vld [vmem:[%s3 + $0x28] sm:$0xff]
    %v131 = vld [vmem:[%s3 + $0x30] sm:$0xff]
    %v132 = vld [vmem:[%s3 + $0x38] sm:$0xff]
    %134 = vset.pattern.permute.xlu0 0
    %135 = vperm.xlu0 %134, %v117
    %v136 = vpop.permute.xlu0 %135
    %139 = vset.pattern.permute.xlu0 0
    %140 = vperm.xlu0 %139, %v118
    %v141 = vpop.permute.xlu0 %140
    %144 = vset.pattern.permute.xlu0 0
    %145 = vperm.xlu0 %144, %v119
    %v146 = vpop.permute.xlu0 %145
    %149 = vset.pattern.permute.xlu0 0
    %150 = vperm.xlu0 %149, %v120
    %v151 = vpop.permute.xlu0 %150
    %154 = vset.pattern.permute.xlu0 0
    %155 = vperm.xlu0 %154, %v121
    %v156 = vpop.permute.xlu0 %155
    %159 = vset.pattern.permute.xlu0 0
    %160 = vperm.xlu0 %159, %v122
    %v161 = vpop.permute.xlu0 %160
    %164 = vset.pattern.permute.xlu0 0
    %165 = vperm.xlu0 %164, %v123
    %v166 = vpop.permute.xlu0 %165
    %169 = vset.pattern.permute.xlu0 0
    %170 = vperm.xlu0 %169, %v124
    %v171 = vpop.permute.xlu0 %170
    %v173 = vmul.f32 %v93, %v136
    %v174 = vmul.f32 %v94, %v141
    %v175 = vmul.f32 %v95, %v146
    %v176 = vmul.f32 %v96, %v151
    %v177 = vmul.f32 %v97, %v156
    %v178 = vmul.f32 %v98, %v161
    %v179 = vmul.f32 %v99, %v166
    %v180 = vmul.f32 %v100, %v171
    %v181 = vrot.slane %v173, 4
    %v182 = vadd.f32 %v173, %v181
    %v183 = vrot.slane %v182, 2
    %v184 = vadd.f32 %v182, %v183
    %v185 = vrot.slane %v184, 1
    %v186 = vadd.f32 %v184, %v185
    %v187 = vrot.slane %v174, 4
    %v188 = vadd.f32 %v174, %v187
    %v189 = vrot.slane %v188, 2
    %v190 = vadd.f32 %v188, %v189
    %v191 = vrot.slane %v190, 1
    %v192 = vadd.f32 %v190, %v191
    %v193 = vrot.slane %v175, 4
    %v194 = vadd.f32 %v175, %v193
    %v195 = vrot.slane %v194, 2
    %v196 = vadd.f32 %v194, %v195
    %v197 = vrot.slane %v196, 1
    %v198 = vadd.f32 %v196, %v197
    %v199 = vrot.slane %v176, 4
    %v200 = vadd.f32 %v176, %v199
    %v201 = vrot.slane %v200, 2
    %v202 = vadd.f32 %v200, %v201
    %v203 = vrot.slane %v202, 1
    %v204 = vadd.f32 %v202, %v203
    %v205 = vrot.slane %v177, 4
    %v206 = vadd.f32 %v177, %v205
    %v207 = vrot.slane %v206, 2
    %v208 = vadd.f32 %v206, %v207
    %v209 = vrot.slane %v208, 1
    %v210 = vadd.f32 %v208, %v209
    %v211 = vrot.slane %v178, 4
    %v212 = vadd.f32 %v178, %v211
    %v213 = vrot.slane %v212, 2
    %v214 = vadd.f32 %v212, %v213
    %v215 = vrot.slane %v214, 1
    %v216 = vadd.f32 %v214, %v215
    %v217 = vrot.slane %v179, 4
    %v218 = vadd.f32 %v179, %v217
    %v219 = vrot.slane %v218, 2
    %v220 = vadd.f32 %v218, %v219
    %v221 = vrot.slane %v220, 1
    %v222 = vadd.f32 %v220, %v221
    %v223 = vrot.slane %v180, 4
    %v224 = vadd.f32 %v180, %v223
    %v225 = vrot.slane %v224, 2
    %v226 = vadd.f32 %v224, %v225
    %v227 = vrot.slane %v226, 1
    %v228 = vadd.f32 %v226, %v227
    %230 = vset.pattern.permute.xlu0 0
    %231 = vperm.xlu0 %230, %v125
    %v232 = vpop.permute.xlu0 %231
    %235 = vset.pattern.permute.xlu0 0
    %236 = vperm.xlu0 %235, %v126
    %v237 = vpop.permute.xlu0 %236
    %240 = vset.pattern.permute.xlu0 0
    %241 = vperm.xlu0 %240, %v127
    %v242 = vpop.permute.xlu0 %241
    %245 = vset.pattern.permute.xlu0 0
    %246 = vperm.xlu0 %245, %v128
    %v247 = vpop.permute.xlu0 %246
    %250 = vset.pattern.permute.xlu0 0
    %251 = vperm.xlu0 %250, %v129
    %v252 = vpop.permute.xlu0 %251
    %255 = vset.pattern.permute.xlu0 0
    %256 = vperm.xlu0 %255, %v130
    %v257 = vpop.permute.xlu0 %256
    %260 = vset.pattern.permute.xlu0 0
    %261 = vperm.xlu0 %260, %v131
    %v262 = vpop.permute.xlu0 %261
    %265 = vset.pattern.permute.xlu0 0
    %266 = vperm.xlu0 %265, %v132
    %v267 = vpop.permute.xlu0 %266
    %v269 = vmul.f32 %v109, %v232
    %v270 = vmul.f32 %v110, %v237
    %v271 = vmul.f32 %v111, %v242
    %v272 = vmul.f32 %v112, %v247
    %v273 = vmul.f32 %v113, %v252
    %v274 = vmul.f32 %v114, %v257
    %v275 = vmul.f32 %v115, %v262
    %v276 = vmul.f32 %v116, %v267
    %v277 = vrot.slane %v269, 4
    %v278 = vadd.f32 %v269, %v277
    %v279 = vrot.slane %v278, 2
    %v280 = vadd.f32 %v278, %v279
    %v281 = vrot.slane %v280, 1
    %v282 = vadd.f32 %v280, %v281
    %v283 = vrot.slane %v270, 4
    %v284 = vadd.f32 %v270, %v283
    %v285 = vrot.slane %v284, 2
    %v286 = vadd.f32 %v284, %v285
    %v287 = vrot.slane %v286, 1
    %v288 = vadd.f32 %v286, %v287
    %v289 = vrot.slane %v271, 4
    %v290 = vadd.f32 %v271, %v289
    %v291 = vrot.slane %v290, 2
    %v292 = vadd.f32 %v290, %v291
    %v293 = vrot.slane %v292, 1
    %v294 = vadd.f32 %v292, %v293
    %v295 = vrot.slane %v272, 4
    %v296 = vadd.f32 %v272, %v295
    %v297 = vrot.slane %v296, 2
    %v298 = vadd.f32 %v296, %v297
    %v299 = vrot.slane %v298, 1
    %v300 = vadd.f32 %v298, %v299
    %v301 = vrot.slane %v273, 4
    %v302 = vadd.f32 %v273, %v301
    %v303 = vrot.slane %v302, 2
    %v304 = vadd.f32 %v302, %v303
    %v305 = vrot.slane %v304, 1
    %v306 = vadd.f32 %v304, %v305
    %v307 = vrot.slane %v274, 4
    %v308 = vadd.f32 %v274, %v307
    %v309 = vrot.slane %v308, 2
    %v310 = vadd.f32 %v308, %v309
    %v311 = vrot.slane %v310, 1
    %v312 = vadd.f32 %v310, %v311
    %v313 = vrot.slane %v275, 4
    %v314 = vadd.f32 %v275, %v313
    %v315 = vrot.slane %v314, 2
    %v316 = vadd.f32 %v314, %v315
    %v317 = vrot.slane %v316, 1
    %v318 = vadd.f32 %v316, %v317
    %v319 = vrot.slane %v276, 4
    %v320 = vadd.f32 %v276, %v319
    %v321 = vrot.slane %v320, 2
    %v322 = vadd.f32 %v320, %v321
    %v323 = vrot.slane %v322, 1
    %v324 = vadd.f32 %v322, %v323
    %vm325 = vcmask 7168
    %v326 = vsel %vm325, %v117, 0.0
    %v327 = vrot.slane %v326, 4
    %v328 = vadd.f32 %v326, %v327
    %v329 = vrot.slane %v328, 2
    %v330 = vadd.f32 %v328, %v329
    %v331 = vrot.slane %v330, 1
    %v332 = vadd.f32 %v330, %v331
    %v333 = vsel %vm325, %v118, 0.0
    %v334 = vrot.slane %v333, 4
    %v335 = vadd.f32 %v333, %v334
    %v336 = vrot.slane %v335, 2
    %v337 = vadd.f32 %v335, %v336
    %v338 = vrot.slane %v337, 1
    %v339 = vadd.f32 %v337, %v338
    %v340 = vsel %vm325, %v119, 0.0
    %v341 = vrot.slane %v340, 4
    %v342 = vadd.f32 %v340, %v341
    %v343 = vrot.slane %v342, 2
    %v344 = vadd.f32 %v342, %v343
    %v345 = vrot.slane %v344, 1
    %v346 = vadd.f32 %v344, %v345
    %v347 = vsel %vm325, %v120, 0.0
    %v348 = vrot.slane %v347, 4
    %v349 = vadd.f32 %v347, %v348
    %v350 = vrot.slane %v349, 2
    %v351 = vadd.f32 %v349, %v350
    %v352 = vrot.slane %v351, 1
    %v353 = vadd.f32 %v351, %v352
    %v354 = vsel %vm325, %v121, 0.0
    %v355 = vrot.slane %v354, 4
    %v356 = vadd.f32 %v354, %v355
    %v357 = vrot.slane %v356, 2
    %v358 = vadd.f32 %v356, %v357
    %v359 = vrot.slane %v358, 1
    %v360 = vadd.f32 %v358, %v359
    %v361 = vsel %vm325, %v122, 0.0
    %v362 = vrot.slane %v361, 4
    %v363 = vadd.f32 %v361, %v362
    %v364 = vrot.slane %v363, 2
    %v365 = vadd.f32 %v363, %v364
    %v366 = vrot.slane %v365, 1
    %v367 = vadd.f32 %v365, %v366
    %v368 = vsel %vm325, %v123, 0.0
    %v369 = vrot.slane %v368, 4
    %v370 = vadd.f32 %v368, %v369
    %v371 = vrot.slane %v370, 2
    %v372 = vadd.f32 %v370, %v371
    %v373 = vrot.slane %v372, 1
    %v374 = vadd.f32 %v372, %v373
    %v375 = vsel %vm325, %v124, 0.0
    %v376 = vrot.slane %v375, 4
    %v377 = vadd.f32 %v375, %v376
    %v378 = vrot.slane %v377, 2
    %v379 = vadd.f32 %v377, %v378
    %v380 = vrot.slane %v379, 1
    %v381 = vadd.f32 %v379, %v380
    %v382 = vmax.f32 %v332, 1e-09
    %v383 = vmax.f32 %v339, 1e-09
    %v384 = vmax.f32 %v346, 1e-09
    %v385 = vmax.f32 %v353, 1e-09
    %v386 = vmax.f32 %v360, 1e-09
    %v387 = vmax.f32 %v367, 1e-09
    %v388 = vmax.f32 %v374, 1e-09
    %v389 = vmax.f32 %v381, 1e-09
    %v390 = vsel %vm325, %v125, 0.0
    %v391 = vrot.slane %v390, 4
    %v392 = vadd.f32 %v390, %v391
    %v393 = vrot.slane %v392, 2
    %v394 = vadd.f32 %v392, %v393
    %v395 = vrot.slane %v394, 1
    %v396 = vadd.f32 %v394, %v395
    %v397 = vsel %vm325, %v126, 0.0
    %v398 = vrot.slane %v397, 4
    %v399 = vadd.f32 %v397, %v398
    %v400 = vrot.slane %v399, 2
    %v401 = vadd.f32 %v399, %v400
    %v402 = vrot.slane %v401, 1
    %v403 = vadd.f32 %v401, %v402
    %v404 = vsel %vm325, %v127, 0.0
    %v405 = vrot.slane %v404, 4
    %v406 = vadd.f32 %v404, %v405
    %v407 = vrot.slane %v406, 2
    %v408 = vadd.f32 %v406, %v407
    %v409 = vrot.slane %v408, 1
    %v410 = vadd.f32 %v408, %v409
    %v411 = vsel %vm325, %v128, 0.0
    %v412 = vrot.slane %v411, 4
    %v413 = vadd.f32 %v411, %v412
    %v414 = vrot.slane %v413, 2
    %v415 = vadd.f32 %v413, %v414
    %v416 = vrot.slane %v415, 1
    %v417 = vadd.f32 %v415, %v416
    %v418 = vsel %vm325, %v129, 0.0
    %v419 = vrot.slane %v418, 4
    %v420 = vadd.f32 %v418, %v419
    %v421 = vrot.slane %v420, 2
    %v422 = vadd.f32 %v420, %v421
    %v423 = vrot.slane %v422, 1
    %v424 = vadd.f32 %v422, %v423
    %v425 = vsel %vm325, %v130, 0.0
    %v426 = vrot.slane %v425, 4
    %v427 = vadd.f32 %v425, %v426
    %v428 = vrot.slane %v427, 2
    %v429 = vadd.f32 %v427, %v428
    %v430 = vrot.slane %v429, 1
    %v431 = vadd.f32 %v429, %v430
    %v432 = vsel %vm325, %v131, 0.0
    %v433 = vrot.slane %v432, 4
    %v434 = vadd.f32 %v432, %v433
    %v435 = vrot.slane %v434, 2
    %v436 = vadd.f32 %v434, %v435
    %v437 = vrot.slane %v436, 1
    %v438 = vadd.f32 %v436, %v437
    %v439 = vsel %vm325, %v132, 0.0
    %v440 = vrot.slane %v439, 4
    %v441 = vadd.f32 %v439, %v440
    %v442 = vrot.slane %v441, 2
    %v443 = vadd.f32 %v441, %v442
    %v444 = vrot.slane %v443, 1
    %v445 = vadd.f32 %v443, %v444
    %v446 = vmax.f32 %v396, 1e-09
    %v447 = vmax.f32 %v403, 1e-09
    %v448 = vmax.f32 %v410, 1e-09
    %v449 = vmax.f32 %v417, 1e-09
    %v450 = vmax.f32 %v424, 1e-09
    %v451 = vmax.f32 %v431, 1e-09
    %v452 = vmax.f32 %v438, 1e-09
    %v453 = vmax.f32 %v445, 1e-09
    %v454 = vrcp.pop %v382
    %v455 = vrcp.pop %v383
    %v456 = vrcp.pop %v384
    %v457 = vrcp.pop %v385
    %v458 = vrcp.pop %v386
    %v459 = vrcp.pop %v387
    %v460 = vrcp.pop %v388
    %v461 = vrcp.pop %v389
    %463 = vset.pattern.permute.xlu0 0
    %464 = vperm.xlu0 %463, %v454
    %v465 = vpop.permute.xlu0 %464
    %468 = vset.pattern.permute.xlu0 0
    %469 = vperm.xlu0 %468, %v455
    %v470 = vpop.permute.xlu0 %469
    %473 = vset.pattern.permute.xlu0 0
    %474 = vperm.xlu0 %473, %v456
    %v475 = vpop.permute.xlu0 %474
    %478 = vset.pattern.permute.xlu0 0
    %479 = vperm.xlu0 %478, %v457
    %v480 = vpop.permute.xlu0 %479
    %483 = vset.pattern.permute.xlu0 0
    %484 = vperm.xlu0 %483, %v458
    %v485 = vpop.permute.xlu0 %484
    %488 = vset.pattern.permute.xlu0 0
    %489 = vperm.xlu0 %488, %v459
    %v490 = vpop.permute.xlu0 %489
    %493 = vset.pattern.permute.xlu0 0
    %494 = vperm.xlu0 %493, %v460
    %v495 = vpop.permute.xlu0 %494
    %498 = vset.pattern.permute.xlu0 0
    %499 = vperm.xlu0 %498, %v461
    %v500 = vpop.permute.xlu0 %499
    %v502 = vmul.f32 %v186, %v465
    %v503 = vmul.f32 %v192, %v470
    %v504 = vmul.f32 %v198, %v475
    %v505 = vmul.f32 %v204, %v480
    %v506 = vmul.f32 %v210, %v485
    %v507 = vmul.f32 %v216, %v490
    %v508 = vmul.f32 %v222, %v495
    %v509 = vmul.f32 %v228, %v500
    %v510 = vrcp.pop %v446
    %v511 = vrcp.pop %v447
    %v512 = vrcp.pop %v448
    %v513 = vrcp.pop %v449
    %v514 = vrcp.pop %v450
    %v515 = vrcp.pop %v451
    %v516 = vrcp.pop %v452
    %v517 = vrcp.pop %v453
    %519 = vset.pattern.permute.xlu0 0
    %520 = vperm.xlu0 %519, %v510
    %v521 = vpop.permute.xlu0 %520
    %524 = vset.pattern.permute.xlu0 0
    %525 = vperm.xlu0 %524, %v511
    %v526 = vpop.permute.xlu0 %525
    %529 = vset.pattern.permute.xlu0 0
    %530 = vperm.xlu0 %529, %v512
    %v531 = vpop.permute.xlu0 %530
    %534 = vset.pattern.permute.xlu0 0
    %535 = vperm.xlu0 %534, %v513
    %v536 = vpop.permute.xlu0 %535
    %539 = vset.pattern.permute.xlu0 0
    %540 = vperm.xlu0 %539, %v514
    %v541 = vpop.permute.xlu0 %540
    %544 = vset.pattern.permute.xlu0 0
    %545 = vperm.xlu0 %544, %v515
    %v546 = vpop.permute.xlu0 %545
    %549 = vset.pattern.permute.xlu0 0
    %550 = vperm.xlu0 %549, %v516
    %v551 = vpop.permute.xlu0 %550
    %554 = vset.pattern.permute.xlu0 0
    %555 = vperm.xlu0 %554, %v517
    %v556 = vpop.permute.xlu0 %555
    %v558 = vmul.f32 %v282, %v521
    %v559 = vmul.f32 %v288, %v526
    %v560 = vmul.f32 %v294, %v531
    %v561 = vmul.f32 %v300, %v536
    %v562 = vmul.f32 %v306, %v541
    %v563 = vmul.f32 %v312, %v546
    %v564 = vmul.f32 %v318, %v551
    %v565 = vmul.f32 %v324, %v556
    %v566 = vsub.f32 %v502, %v558
    %v567 = vsub.f32 %v503, %v559
    %v568 = vsub.f32 %v504, %v560
    %v569 = vsub.f32 %v505, %v561
    %v570 = vsub.f32 %v506, %v562
    %v571 = vsub.f32 %v507, %v563
    %v572 = vsub.f32 %v508, %v564
    %v573 = vsub.f32 %v509, %v565
    %v574 = vand.u32 2147483647, %v566
    %v575 = vand.u32 2147483647, %v567
    %v576 = vand.u32 2147483647, %v568
    %v577 = vand.u32 2147483647, %v569
    %v578 = vand.u32 2147483647, %v570
    %v579 = vand.u32 2147483647, %v571
    %v580 = vand.u32 2147483647, %v572
    %v581 = vand.u32 2147483647, %v573
    %v582 = vld [vmem:[%s4] sm:$0xff]
    %v583 = vld [vmem:[%s4 + $0x8] sm:$0xff]
    %v584 = vld [vmem:[%s4 + $0x10] sm:$0xff]
    %v585 = vld [vmem:[%s4 + $0x18] sm:$0xff]
    %v586 = vld [vmem:[%s4 + $0x20] sm:$0xff]
    %v587 = vld [vmem:[%s4 + $0x28] sm:$0xff]
    %v588 = vld [vmem:[%s4 + $0x30] sm:$0xff]
    %v589 = vld [vmem:[%s4 + $0x38] sm:$0xff]
    %v590 = vld [vmem:[%s4 + $0x40] sm:$0xff]
    %v591 = vld [vmem:[%s4 + $0x48] sm:$0xff]
    %v592 = vld [vmem:[%s4 + $0x50] sm:$0xff]
    %v593 = vld [vmem:[%s4 + $0x58] sm:$0xff]
    %v594 = vld [vmem:[%s4 + $0x60] sm:$0xff]
    %v595 = vld [vmem:[%s4 + $0x68] sm:$0xff]
    %v596 = vld [vmem:[%s4 + $0x70] sm:$0xff]
    %v597 = vld [vmem:[%s4 + $0x78] sm:$0xff]
    %v598 = vld [vmem:[#allocation7] sm:$0xff]
    %v599 = vld [vmem:[#allocation7 + $0x8] sm:$0xff]
    %v600 = vld [vmem:[#allocation7 + $0x10] sm:$0xff]
    %v601 = vld [vmem:[#allocation7 + $0x18] sm:$0xff]
    %v602 = vld [vmem:[#allocation7 + $0x20] sm:$0xff]
    %v603 = vld [vmem:[#allocation7 + $0x28] sm:$0xff]
    %v604 = vld [vmem:[#allocation7 + $0x30] sm:$0xff]
    %v605 = vld [vmem:[#allocation7 + $0x38] sm:$0xff]
    %v606 = vld [vmem:[#allocation7 + $0x40] sm:$0xff]
    %v607 = vld [vmem:[#allocation7 + $0x48] sm:$0xff]
    %v608 = vld [vmem:[#allocation7 + $0x50] sm:$0xff]
    %v609 = vld [vmem:[#allocation7 + $0x58] sm:$0xff]
    %v610 = vld [vmem:[#allocation7 + $0x60] sm:$0xff]
    %v611 = vld [vmem:[#allocation7 + $0x68] sm:$0xff]
    %v612 = vld [vmem:[#allocation7 + $0x70] sm:$0xff]
    %v613 = vld [vmem:[#allocation7 + $0x78] sm:$0xff]
    %vm622 = vcmask 1041409
    %v623 = vsel %vm622, %v559, %v558
    %vm624 = vcmask 1042434
    %v625 = vsel %vm624, %v560, %v623
    %vm626 = vcmask 1043459
    %v627 = vsel %vm626, %v561, %v625
    %vm628 = vcmask 1044484
    %v629 = vsel %vm628, %v562, %v627
    %vm630 = vcmask 1045509
    %v631 = vsel %vm630, %v563, %v629
    %vm632 = vcmask 1046534
    %v633 = vsel %vm632, %v564, %v631
    %vm634 = vcmask 1047559
    %v635 = vsel %vm634, %v565, %v633
    %637 = vmatprep.subr.mxu0 0.0
    %638 = vmatpush1.msra.mxu0 %v598
    %639 = vmatprep.subr.mxu0 0.0
    %640 = vmatpush1.msra.mxu0 %v599
    %641 = vmatprep.subr.mxu0 0.0
    %642 = vmatpush1.msra.mxu0 %v600
    %643 = vmatprep.subr.mxu0 0.0
    %644 = vmatpush1.msra.mxu0 %v601
    %645 = vmatprep.subr.mxu0 0.0
    %646 = vmatpush1.msra.mxu0 %v602
    %647 = vmatprep.subr.mxu0 0.0
    %648 = vmatpush1.msra.mxu0 %v603
    %649 = vmatprep.subr.mxu0 0.0
    %650 = vmatpush1.msra.mxu0 %v604
    %651 = vmatprep.subr.mxu0 0.0
    %652 = vmatpush1.msra.mxu0 %v605
    %653 = vmatprep.subr.mxu0 0.0
    %654 = vmatpush1.msra.mxu0 %v606
    %655 = vmatprep.subr.mxu0 0.0
    %656 = vmatpush1.msra.mxu0 %v607
    %657 = vmatprep.subr.mxu0 0.0
    %658 = vmatpush1.msra.mxu0 %v608
    %659 = vmatprep.subr.mxu0 0.0
    %660 = vmatpush1.msra.mxu0 %v609
    %661 = vmatprep.subr.mxu0 0.0
    %662 = vmatpush1.msra.mxu0 %v610
    %663 = vmatprep.subr.mxu0 0.0
    %664 = vmatpush1.msra.mxu0 %v611
    %665 = vmatprep.subr.mxu0 0.0
    %666 = vmatpush1.msra.mxu0 %v612
    %667 = vmatprep.subr.mxu0 0.0
    %668 = vmatpush1.msra.mxu0 %v613
    %669 = vmatprep.subr.mxu0 0.0
    %670 = vmatpush1.msra.mxu0 0.0
    %671 = vmatprep.subr.mxu0 0.0
    %672 = vmatpush1.msra.mxu0 0.0
    %673 = vmatprep.subr.mxu0 0.0
    %674 = vmatpush1.msra.mxu0 0.0
    %675 = vmatprep.subr.mxu0 0.0
    %676 = vmatpush1.msra.mxu0 0.0
    %677 = vmatprep.subr.mxu0 0.0
    %678 = vmatpush1.msra.mxu0 0.0
    %679 = vmatprep.subr.mxu0 0.0
    %680 = vmatpush1.msra.mxu0 0.0
    %681 = vmatprep.subr.mxu0 0.0
    %682 = vmatpush1.msra.mxu0 0.0
    %683 = vmatprep.subr.mxu0 0.0
    %684 = vmatpush1.msra.mxu0 0.0
    %685 = vmatprep.subr.mxu0 0.0
    %686 = vmatpush1.msra.mxu0 0.0
    %687 = vmatprep.subr.mxu0 0.0
    %688 = vmatpush1.msra.mxu0 0.0
    %689 = vmatprep.subr.mxu0 0.0
    %690 = vmatpush1.msra.mxu0 0.0
    %691 = vmatprep.subr.mxu0 0.0
    %692 = vmatpush1.msra.mxu0 0.0
    %693 = vmatprep.subr.mxu0 0.0
    %694 = vmatpush1.msra.mxu0 0.0
    %695 = vmatprep.subr.mxu0 0.0
    %696 = vmatpush1.msra.mxu0 0.0
    %697 = vmatprep.subr.mxu0 0.0
    %698 = vmatpush1.msra.mxu0 0.0
    %699 = vmatprep.subr.mxu0 0.0
    %700 = vmatpush1.msra.mxu0 0.0
    %701 = vmatprep.mubr.f32.mxu0 0.0
    %702 = vmatmul.mubr.f32.gmra.mrb[0].mxu0 %v635
    %v703 = vpop.f32.mrb[0].mxu0
    %v704 = vadd.f32 0.0, %v703
    %v705 = vpop.f32.mrb[0].mxu0
    %706 = vdwg.mxu0
    %v715 = vsel %vm622, %v503, %v502
    %v716 = vsel %vm624, %v504, %v715
    %v717 = vsel %vm626, %v505, %v716
    %v718 = vsel %vm628, %v506, %v717
    %v719 = vsel %vm630, %v507, %v718
    %v720 = vsel %vm632, %v508, %v719
    %v721 = vsel %vm634, %v509, %v720
    %723 = vmatprep.subr.mxu0 0.0
    %724 = vmatpush1.msra.mxu0 %v582
    %725 = vmatprep.subr.mxu0 0.0
    %726 = vmatpush1.msra.mxu0 %v583
    %727 = vmatprep.subr.mxu0 0.0
    %728 = vmatpush1.msra.mxu0 %v584
    %729 = vmatprep.subr.mxu0 0.0
    %730 = vmatpush1.msra.mxu0 %v585
    %731 = vmatprep.subr.mxu0 0.0
    %732 = vmatpush1.msra.mxu0 %v586
    %733 = vmatprep.subr.mxu0 0.0
    %734 = vmatpush1.msra.mxu0 %v587
    %735 = vmatprep.subr.mxu0 0.0
    %736 = vmatpush1.msra.mxu0 %v588
    %737 = vmatprep.subr.mxu0 0.0
    %738 = vmatpush1.msra.mxu0 %v589
    %739 = vmatprep.subr.mxu0 0.0
    %740 = vmatpush1.msra.mxu0 %v590
    %741 = vmatprep.subr.mxu0 0.0
    %742 = vmatpush1.msra.mxu0 %v591
    %743 = vmatprep.subr.mxu0 0.0
    %744 = vmatpush1.msra.mxu0 %v592
    %745 = vmatprep.subr.mxu0 0.0
    %746 = vmatpush1.msra.mxu0 %v593
    %747 = vmatprep.subr.mxu0 0.0
    %748 = vmatpush1.msra.mxu0 %v594
    %749 = vmatprep.subr.mxu0 0.0
    %750 = vmatpush1.msra.mxu0 %v595
    %751 = vmatprep.subr.mxu0 0.0
    %752 = vmatpush1.msra.mxu0 %v596
    %753 = vmatprep.subr.mxu0 0.0
    %754 = vmatpush1.msra.mxu0 %v597
    %755 = vmatprep.subr.mxu0 0.0
    %756 = vmatpush1.msra.mxu0 0.0
    %757 = vmatprep.subr.mxu0 0.0
    %758 = vmatpush1.msra.mxu0 0.0
    %759 = vmatprep.subr.mxu0 0.0
    %760 = vmatpush1.msra.mxu0 0.0
    %761 = vmatprep.subr.mxu0 0.0
    %762 = vmatpush1.msra.mxu0 0.0
    %763 = vmatprep.subr.mxu0 0.0
    %764 = vmatpush1.msra.mxu0 0.0
    %765 = vmatprep.subr.mxu0 0.0
    %766 = vmatpush1.msra.mxu0 0.0
    %767 = vmatprep.subr.mxu0 0.0
    %768 = vmatpush1.msra.mxu0 0.0
    %769 = vmatprep.subr.mxu0 0.0
    %770 = vmatpush1.msra.mxu0 0.0
    %771 = vmatprep.subr.mxu0 0.0
    %772 = vmatpush1.msra.mxu0 0.0
    %773 = vmatprep.subr.mxu0 0.0
    %774 = vmatpush1.msra.mxu0 0.0
    %775 = vmatprep.subr.mxu0 0.0
    %776 = vmatpush1.msra.mxu0 0.0
    %777 = vmatprep.subr.mxu0 0.0
    %778 = vmatpush1.msra.mxu0 0.0
    %779 = vmatprep.subr.mxu0 0.0
    %780 = vmatpush1.msra.mxu0 0.0
    %781 = vmatprep.subr.mxu0 0.0
    %782 = vmatpush1.msra.mxu0 0.0
    %783 = vmatprep.subr.mxu0 0.0
    %784 = vmatpush1.msra.mxu0 0.0
    %785 = vmatprep.subr.mxu0 0.0
    %786 = vmatpush1.msra.mxu0 0.0
    %787 = vmatprep.mubr.f32.mxu0 0.0
    %788 = vmatmul.mubr.f32.gmra.mrb[0].mxu0 %v721
    %v789 = vpop.f32.mrb[0].mxu0
    %v790 = vadd.f32 %v704, %v789
    %v791 = vpop.f32.mrb[0].mxu0
    %792 = vdwg.mxu0
    %v793 = vld [vmem:[#allocation8] sm:$0xff]
    %v794 = vld [vmem:[#allocation8 + $0x8] sm:$0xff]
    %v795 = vld [vmem:[#allocation8 + $0x10] sm:$0xff]
    %v796 = vld [vmem:[#allocation8 + $0x18] sm:$0xff]
    %v797 = vld [vmem:[#allocation8 + $0x20] sm:$0xff]
    %v798 = vld [vmem:[#allocation8 + $0x28] sm:$0xff]
    %v799 = vld [vmem:[#allocation8 + $0x30] sm:$0xff]
    %v800 = vld [vmem:[#allocation8 + $0x38] sm:$0xff]
    %v801 = vld [vmem:[#allocation8 + $0x40] sm:$0xff]
    %v802 = vld [vmem:[#allocation8 + $0x48] sm:$0xff]
    %v803 = vld [vmem:[#allocation8 + $0x50] sm:$0xff]
    %v804 = vld [vmem:[#allocation8 + $0x58] sm:$0xff]
    %v805 = vld [vmem:[#allocation8 + $0x60] sm:$0xff]
    %v806 = vld [vmem:[#allocation8 + $0x68] sm:$0xff]
    %v807 = vld [vmem:[#allocation8 + $0x70] sm:$0xff]
    %v808 = vld [vmem:[#allocation8 + $0x78] sm:$0xff]
    %v817 = vsel %vm622, %v575, %v574
    %v818 = vsel %vm624, %v576, %v817
    %v819 = vsel %vm626, %v577, %v818
    %v820 = vsel %vm628, %v578, %v819
    %v821 = vsel %vm630, %v579, %v820
    %v822 = vsel %vm632, %v580, %v821
    %v823 = vsel %vm634, %v581, %v822
    %825 = vmatprep.subr.mxu0 0.0
    %826 = vmatpush1.msra.mxu0 %v793
    %827 = vmatprep.subr.mxu0 0.0
    %828 = vmatpush1.msra.mxu0 %v794
    %829 = vmatprep.subr.mxu0 0.0
    %830 = vmatpush1.msra.mxu0 %v795
    %831 = vmatprep.subr.mxu0 0.0
    %832 = vmatpush1.msra.mxu0 %v796
    %833 = vmatprep.subr.mxu0 0.0
    %834 = vmatpush1.msra.mxu0 %v797
    %835 = vmatprep.subr.mxu0 0.0
    %836 = vmatpush1.msra.mxu0 %v798
    %837 = vmatprep.subr.mxu0 0.0
    %838 = vmatpush1.msra.mxu0 %v799
    %839 = vmatprep.subr.mxu0 0.0
    %840 = vmatpush1.msra.mxu0 %v800
    %841 = vmatprep.subr.mxu0 0.0
    %842 = vmatpush1.msra.mxu0 %v801
    %843 = vmatprep.subr.mxu0 0.0
    %844 = vmatpush1.msra.mxu0 %v802
    %845 = vmatprep.subr.mxu0 0.0
    %846 = vmatpush1.msra.mxu0 %v803
    %847 = vmatprep.subr.mxu0 0.0
    %848 = vmatpush1.msra.mxu0 %v804
    %849 = vmatprep.subr.mxu0 0.0
    %850 = vmatpush1.msra.mxu0 %v805
    %851 = vmatprep.subr.mxu0 0.0
    %852 = vmatpush1.msra.mxu0 %v806
    %853 = vmatprep.subr.mxu0 0.0
    %854 = vmatpush1.msra.mxu0 %v807
    %855 = vmatprep.subr.mxu0 0.0
    %856 = vmatpush1.msra.mxu0 %v808
    %857 = vmatprep.subr.mxu0 0.0
    %858 = vmatpush1.msra.mxu0 0.0
    %859 = vmatprep.subr.mxu0 0.0
    %860 = vmatpush1.msra.mxu0 0.0
    %861 = vmatprep.subr.mxu0 0.0
    %862 = vmatpush1.msra.mxu0 0.0
    %863 = vmatprep.subr.mxu0 0.0
    %864 = vmatpush1.msra.mxu0 0.0
    %865 = vmatprep.subr.mxu0 0.0
    %866 = vmatpush1.msra.mxu0 0.0
    %867 = vmatprep.subr.mxu0 0.0
    %868 = vmatpush1.msra.mxu0 0.0
    %869 = vmatprep.subr.mxu0 0.0
    %870 = vmatpush1.msra.mxu0 0.0
    %871 = vmatprep.subr.mxu0 0.0
    %872 = vmatpush1.msra.mxu0 0.0
    %873 = vmatprep.subr.mxu0 0.0
    %874 = vmatpush1.msra.mxu0 0.0
    %875 = vmatprep.subr.mxu0 0.0
    %876 = vmatpush1.msra.mxu0 0.0
    %877 = vmatprep.subr.mxu0 0.0
    %878 = vmatpush1.msra.mxu0 0.0
    %879 = vmatprep.subr.mxu0 0.0
    %880 = vmatpush1.msra.mxu0 0.0
    %881 = vmatprep.subr.mxu0 0.0
    %882 = vmatpush1.msra.mxu0 0.0
    %883 = vmatprep.subr.mxu0 0.0
    %884 = vmatpush1.msra.mxu0 0.0
    %885 = vmatprep.subr.mxu0 0.0
    %886 = vmatpush1.msra.mxu0 0.0
    %887 = vmatprep.subr.mxu0 0.0
    %888 = vmatpush1.msra.mxu0 0.0
    %889 = vmatprep.mubr.f32.mxu0 0.0
    %890 = vmatmul.mubr.f32.gmra.mrb[0].mxu0 %v823
    %v891 = vpop.f32.mrb[0].mxu0
    %v892 = vadd.f32 0.0, %v891
    %v893 = vpop.f32.mrb[0].mxu0
    %894 = vdwg.mxu0
    %v895 = vadd.f32 %v790, %v892
    %v896 = vld [vmem:[%s7] sm:$0x1]
    %v898 = vlaneseq
    %v899 = vshrl.u32 %v898, 7
    %v900 = vsub.s32 0, %v899
    %v901 = vrot.slane %v896, %v900
    %v903 = vadd.f32 %v895, %v901
    %904 = vst [vmem:[#allocation10] sm:$0xff] %v903
    // Predicated region
    $region50: #{tpu_custom_call.1} parent=1 // pred_check
      _
    $region51: #{tpu_custom_call.1} parent=1 // pred_check_branch
      %906 = sbr.rel (0) target = $region53
    $region52: #{tpu_custom_call.1} parent=1 // pred_region
      %s908 = ssub.s32 128, 128
      %909 = vsyncadd [#allocation4], %s908
      %s911 = sshll.u32 [#allocation10], 4
      %s912 = int_to_ptr.vmem [resolvable:$true] %s911
      %914 = dma.vmem_to_hbm [thread:$0]  %s912, 128, %s8, [#allocation4]
    $region53: #{tpu_custom_call.1} parent=1 // pred_fallthru
      _
    // Predicated region
    $region54: #{tpu_custom_call.1} parent=1 // pred_check
      _
    $region55: #{tpu_custom_call.1} parent=1 // pred_check_branch
      %916 = sbr.rel (0) target = $region57
    $region56: #{tpu_custom_call.1} parent=1 // pred_region
      %917 = dma.done [#allocation4], 128
    $region57: #{tpu_custom_call.1} parent=1 // pred_fallthru
      _
    %918 = vsyncpa [#allocation3], 1
    %919 = vsyncpa [#allocation6], 1
    %920 = vsyncpa [#allocation9], 1
    %921 = vsyncpa [#allocation4], 1

</llo_original>
